<compile_context>
chip_gen: v5e
topology: v5e:2x2
jax: 0.10.0
libtpu: 0.0.40
codegen_flags: <defaults>
</compile_context>

<pallas_src>
import jax
import jax.numpy as jnp
from jax.experimental import pallas as pl
from jax.experimental.pallas import tpu as pltpu


def _mask_attn_head_kernel(x_ref, mask_ref, ww_ref, wb_ref, vw_ref, vb_ref,
                           o_ref, m_sc, l_sc, acc_sc):
    # x_ref:   (bt, st, H)      mask_ref: (bt, st, 1)
    # ww_ref:  (H, Dh)          wb_ref:   (1, Dh)
    # vw_ref:  (Dh, 1)          vb_ref:   (1, 1)
    # o_ref:   (bt, 1, H)
    # m_sc/l_sc: (bt, 1, 1) f32   acc_sc: (bt, 1, H) f32
    si = pl.program_id(1)

    @pl.when(si == 0)
    def _init():
        m_sc[...] = jnp.full_like(m_sc, -jnp.inf)
        l_sc[...] = jnp.zeros_like(l_sc)
        acc_sc[...] = jnp.zeros_like(acc_sc)

    x = x_ref[...]                                   # native dtype, (bt, st, H)
    bt, st, hdim = x.shape

    # --- attention scores: V(tanh(W(x))) + mask -------------------------------
    # 2-D matmuls on the MXU; merging the leading (bt, st) dims keeps the lane
    # dim untouched (layout no-op).
    x2 = x.reshape(bt * st, hdim)                    # (bt*st, H)
    hid = jnp.tanh(
        jnp.dot(x2, ww_ref[...], preferred_element_type=jnp.float32)
        + wb_ref[...].astype(jnp.float32))           # (bt*st, Dh) f32
    s2 = (jnp.dot(hid, vw_ref[...].astype(jnp.float32),
                  preferred_element_type=jnp.float32)
          + vb_ref[...].astype(jnp.float32))         # (bt*st, 1)
    s3 = s2.reshape(bt, st, 1) + mask_ref[...].astype(jnp.float32)   # (bt, st, 1)

    # --- online softmax over the sequence (grid) axis -------------------------
    m_prev = m_sc[...]                                               # (bt, 1, 1)
    m_new = jnp.maximum(m_prev, jnp.max(s3, axis=1, keepdims=True))  # (bt, 1, 1)
    alpha = jnp.exp(m_prev - m_new)                                  # (bt, 1, 1)
    p3 = jnp.exp(s3 - m_new)                                         # (bt, st, 1)

    l_sc[...] = alpha * l_sc[...] + jnp.sum(p3, axis=1, keepdims=True)
    # weighted sum of x over this seq tile (f32 accumulation)
    wx = jnp.sum(p3 * x.astype(jnp.float32), axis=1, keepdims=True)  # (bt, 1, H)
    acc_sc[...] = alpha * acc_sc[...] + wx
    m_sc[...] = m_new

    @pl.when(si == pl.num_programs(1) - 1)
    def _finalize():
        o_ref[...] = (acc_sc[...] / l_sc[...]).astype(o_ref.dtype)


def mask_added_attention_head(x, attention_mask, w_w, w_b, v_w, v_b,
                              *, b_tile=None, s_tile=None):
    """x: (B, S, H); attention_mask: (B, S[, 1]) additive; W: (H, Dh)+(Dh,);
    V: (Dh, 1)+(1,). Returns (B, H)."""
    B, S, H = x.shape
    Dh = w_w.shape[1]
    assert w_w.shape == (H, Dh)
    assert v_w.shape == (Dh, 1), "attention-pooling head expects out_features == 1"

    if attention_mask.ndim == 2:
        attention_mask = attention_mask[:, :, None]
    assert attention_mask.shape == (B, S, 1)

    # Sequence tile: must divide S and be a multiple of 8 (or equal S).
    # ~512 rows keeps the per-step x block in the low-MiB range even for large
    # H in f32 — safe for v7x (64 MiB VMEM) as well as v5e/v6e (128 MiB), and
    # big enough to amortize per-grid-step overhead on v6e.
    if s_tile is None:
        s_tile = S
        for cand in (512, 256, 128, 64, 32, 16, 8):
            if S % cand == 0:
                s_tile = cand
                break
    assert S % s_tile == 0 and (s_tile % 8 == 0 or s_tile == S)

    if b_tile is None:
        b_tile = 1
    assert B % b_tile == 0

    w_b2 = w_b.reshape(1, Dh)
    v_b2 = v_b.reshape(1, 1)

    grid = (B // b_tile, S // s_tile)

    itemsize = jnp.dtype(x.dtype).itemsize
    cost = pl.CostEstimate(
        flops=2 * B * S * H * Dh + 2 * B * S * Dh + 2 * B * S * H,
        transcendentals=B * S * (Dh + 2),
        bytes_accessed=(x.size * itemsize
                        + attention_mask.size * jnp.dtype(attention_mask.dtype).itemsize
                        + B * H * itemsize
                        + (H * Dh + Dh + Dh + 1) * 4),
    )

    out3 = pl.pallas_call(
        _mask_attn_head_kernel,
        out_shape=jax.ShapeDtypeStruct((B, 1, H), x.dtype),
        grid_spec=pltpu.PrefetchScalarGridSpec(
            num_scalar_prefetch=0,
            grid=grid,
            in_specs=[
                pl.BlockSpec((b_tile, s_tile, H), lambda bi, si: (bi, si, 0)),
                pl.BlockSpec((b_tile, s_tile, 1), lambda bi, si: (bi, si, 0)),
                pl.BlockSpec((H, Dh), lambda bi, si: (0, 0)),
                pl.BlockSpec((1, Dh), lambda bi, si: (0, 0)),
                pl.BlockSpec((Dh, 1), lambda bi, si: (0, 0)),
                pl.BlockSpec((1, 1), lambda bi, si: (0, 0)),
            ],
            out_specs=pl.BlockSpec((b_tile, 1, H), lambda bi, si: (bi, 0, 0)),
            scratch_shapes=[
                pltpu.VMEM((b_tile, 1, 1), jnp.float32),   # running max
                pltpu.VMEM((b_tile, 1, 1), jnp.float32),   # running denom
                pltpu.VMEM((b_tile, 1, H), jnp.float32),   # weighted-sum accum
            ],
        ),
        compiler_params=pltpu.CompilerParams(
            dimension_semantics=("parallel", "arbitrary")),
        cost_estimate=cost,
    )(x, attention_mask, w_w, w_b2, v_w, v_b2)

    return out3[:, 0, :]


def _reference(x, mask, w_w, w_b, v_w, v_b):
    xf = x.astype(jnp.float32)
    scores = jnp.tanh(xf @ w_w.astype(jnp.float32) + w_b.astype(jnp.float32))
    scores = scores @ v_w.astype(jnp.float32) + v_b.astype(jnp.float32)  # (B,S,1)
    scores = scores + mask.astype(jnp.float32)
    p = jax.nn.softmax(scores, axis=1)
    return jnp.sum(p * xf, axis=1)                                        # (B,H)


if __name__ == "__main__":
    # Small shapes: batch=2, seq=16, in_features=32, hidden_features=16, out_features=1.
    B, S, H, Dh = 2, 16, 32, 16

    key = jax.random.PRNGKey(0)
    kx, kw1, kb1, kw2, kb2 = jax.random.split(key, 5)

    x = jax.random.normal(kx, (B, S, H), dtype=jnp.float32)

    # Additive attention mask (HF convention): 0 for valid tokens, -1e4 for padding.
    lengths = jnp.array([S, 11], dtype=jnp.int32)
    pos = jnp.arange(S)[None, :]
    attention_mask = jnp.where(pos < lengths[:, None], 0.0, -1.0e4)
    attention_mask = attention_mask.astype(jnp.float32)[:, :, None]       # (B, S, 1)

    bound1 = 1.0 / H ** 0.5
    w_w = jax.random.uniform(kw1, (H, Dh), jnp.float32, -bound1, bound1)
    w_b = jax.random.uniform(kb1, (Dh,), jnp.float32, -bound1, bound1)
    bound2 = 1.0 / Dh ** 0.5
    v_w = jax.random.uniform(kw2, (Dh, 1), jnp.float32, -bound2, bound2)
    v_b = jax.random.uniform(kb2, (1,), jnp.float32, -bound2, bound2)

    # s_tile=8 -> two sequence tiles, exercising the online-softmax accumulation path.
    out = mask_added_attention_head(x, attention_mask, w_w, w_b, v_w, v_b,
                                    b_tile=1, s_tile=8)
    out = jax.block_until_ready(out)

    ref = _reference(x, attention_mask, w_w, w_b, v_w, v_b)
    assert out.shape == (B, H)
    assert jnp.allclose(out, ref, atol=1e-4, rtol=1e-4), \
        float(jnp.max(jnp.abs(out - ref)))

    print("KERNEL_OK")
</pallas_src>

<mosaic_0001>
module attributes {stable_mosaic.version = 11 : i64} {
  func.func @_mask_attn_head_kernel(%arg0: i32, %arg1: i32, %arg2: memref<1x8x32xf32, #tpu.memory_space<vmem>>, %arg3: memref<1x8x1xf32, #tpu.memory_space<vmem>>, %arg4: memref<32x16xf32, #tpu.memory_space<vmem>>, %arg5: memref<1x16xf32, #tpu.memory_space<vmem>>, %arg6: memref<16x1xf32, #tpu.memory_space<vmem>>, %arg7: memref<1x1xf32, #tpu.memory_space<vmem>>, %arg8: memref<1x1x32xf32, #tpu.memory_space<vmem>>, %arg9: memref<1x1x1xf32, #tpu.memory_space<vmem>>, %arg10: memref<1x1x1xf32, #tpu.memory_space<vmem>>, %arg11: memref<1x1x32xf32, #tpu.memory_space<vmem>>) attributes {dimension_semantics = [#tpu.dimension_semantics<parallel>, #tpu.dimension_semantics<arbitrary>], iteration_bounds = array<i64: 2, 2>, scalar_prefetch = 0 : i64, scratch_operands = 3 : i64, tpu.core_type = #tpu.core_type<tc>, window_params = [{transform_indices = @transform_0, window_bounds = array<i64: 1, 8, 32>}, {transform_indices = @transform_1, window_bounds = array<i64: 1, 8, 1>}, {pipeline_mode = #tpu.pipeline_mode<synchronous>, transform_indices = @transform_2, window_bounds = array<i64: 32, 16>}, {pipeline_mode = #tpu.pipeline_mode<synchronous>, transform_indices = @transform_3, window_bounds = array<i64: 1, 16>}, {pipeline_mode = #tpu.pipeline_mode<synchronous>, transform_indices = @transform_4, window_bounds = array<i64: 16, 1>}, {pipeline_mode = #tpu.pipeline_mode<synchronous>, transform_indices = @transform_5, window_bounds = array<i64: 1, 1>}, {transform_indices = @transform_6, window_bounds = array<i64: 1, 1, 32>}]} {
    %c0_i32 = arith.constant 0 : i32
    %0 = arith.cmpi eq, %arg1, %c0_i32 : i32
    %1 = arith.extui %0 : i1 to i32
    %c0_i32_0 = arith.constant 0 : i32
    %2 = arith.cmpi ne, %1, %c0_i32_0 : i32
    scf.if %2 {
      %cst_37 = arith.constant 0xFF800000 : f32
      %47 = vector.broadcast %cst_37 : f32 to vector<1x1x1xf32>
      %c0_38 = arith.constant 0 : index
      %c0_39 = arith.constant 0 : index
      %c0_40 = arith.constant 0 : index
      %48 = vector.load %arg9[%c0_38, %c0_39, %c0_40] : memref<1x1x1xf32, #tpu.memory_space<vmem>>, vector<1x1x1xf32>
      tpu.vector_store %arg9[%c0_38, %c0_39, %c0_40], %47 {strides = array<i32>} : memref<1x1x1xf32, #tpu.memory_space<vmem>>, vector<1x1x1xf32>,
      %cst_41 = arith.constant 0.000000e+00 : f32
      %49 = vector.broadcast %cst_41 : f32 to vector<1x1x1xf32>
      %c0_42 = arith.constant 0 : index
      %c0_43 = arith.constant 0 : index
      %c0_44 = arith.constant 0 : index
      %50 = vector.load %arg10[%c0_42, %c0_43, %c0_44] : memref<1x1x1xf32, #tpu.memory_space<vmem>>, vector<1x1x1xf32>
      tpu.vector_store %arg10[%c0_42, %c0_43, %c0_44], %49 {strides = array<i32>} : memref<1x1x1xf32, #tpu.memory_space<vmem>>, vector<1x1x1xf32>,
      %cst_45 = arith.constant 0.000000e+00 : f32
      %51 = vector.broadcast %cst_45 : f32 to vector<1x1x32xf32>
      %c0_46 = arith.constant 0 : index
      %c0_47 = arith.constant 0 : index
      %c0_48 = arith.constant 0 : index
      %52 = vector.load %arg11[%c0_46, %c0_47, %c0_48] : memref<1x1x32xf32, #tpu.memory_space<vmem>>, vector<1x1x32xf32>
      tpu.vector_store %arg11[%c0_46, %c0_47, %c0_48], %51 {strides = array<i32>} : memref<1x1x32xf32, #tpu.memory_space<vmem>>, vector<1x1x32xf32>,
    } else {
    }
    %c0 = arith.constant 0 : index
    %c0_1 = arith.constant 0 : index
    %c0_2 = arith.constant 0 : index
    %3 = vector.load %arg2[%c0, %c0_1, %c0_2] : memref<1x8x32xf32, #tpu.memory_space<vmem>>, vector<1x8x32xf32>
    %4 = vector.shape_cast %3 : vector<1x8x32xf32> to vector<8x32xf32>
    %c0_3 = arith.constant 0 : index
    %c0_4 = arith.constant 0 : index
    %5 = vector.load %arg4[%c0_3, %c0_4] : memref<32x16xf32, #tpu.memory_space<vmem>>, vector<32x16xf32>
    %cst = arith.constant dense<0.000000e+00> : vector<8x16xf32>
    %6 = tpu.matmul %4, %5, %cst {dimension_numbers = #tpu.dot_dimension_numbers<[1], [0], [0], [1], [0, 0, 1, 1], [], []>} : vector<8x32xf32>, vector<32x16xf32>, vector<8x16xf32> -> vector<8x16xf32>
    %c0_5 = arith.constant 0 : index
    %c0_6 = arith.constant 0 : index
    %7 = vector.load %arg5[%c0_5, %c0_6] : memref<1x16xf32, #tpu.memory_space<vmem>>, vector<1x16xf32>
    %8 = vector.broadcast %7 : vector<1x16xf32> to vector<8x16xf32>
    %9 = arith.addf %6, %8 : vector<8x16xf32>
    %10 = math.tanh %9 : vector<8x16xf32>
    %c0_7 = arith.constant 0 : index
    %c0_8 = arith.constant 0 : index
    %11 = vector.load %arg6[%c0_7, %c0_8] : memref<16x1xf32, #tpu.memory_space<vmem>>, vector<16x1xf32>
    %cst_9 = arith.constant dense<0.000000e+00> : vector<8x1xf32>
    %12 = tpu.matmul %10, %11, %cst_9 {dimension_numbers = #tpu.dot_dimension_numbers<[1], [0], [0], [1], [0, 0, 1, 1], [], []>} : vector<8x16xf32>, vector<16x1xf32>, vector<8x1xf32> -> vector<8x1xf32>
    %c0_10 = arith.constant 0 : index
    %c0_11 = arith.constant 0 : index
    %13 = vector.load %arg7[%c0_10, %c0_11] : memref<1x1xf32, #tpu.memory_space<vmem>>, vector<1x1xf32>
    %14 = vector.broadcast %13 : vector<1x1xf32> to vector<8x1xf32>
    %15 = arith.addf %12, %14 : vector<8x1xf32>
    %16 = vector.shape_cast %15 : vector<8x1xf32> to vector<1x8x1xf32>
    %c0_12 = arith.constant 0 : index
    %c0_13 = arith.constant 0 : index
    %c0_14 = arith.constant 0 : index
    %17 = vector.load %arg3[%c0_12, %c0_13, %c0_14] : memref<1x8x1xf32, #tpu.memory_space<vmem>>, vector<1x8x1xf32>
    %18 = arith.addf %16, %17 : vector<1x8x1xf32>
    %c0_15 = arith.constant 0 : index
    %c0_16 = arith.constant 0 : index
    %c0_17 = arith.constant 0 : index
    %19 = vector.load %arg9[%c0_15, %c0_16, %c0_17] : memref<1x1x1xf32, #tpu.memory_space<vmem>>, vector<1x1x1xf32>
    %cst_18 = arith.constant dense<0xFF800000> : vector<1x1xf32>
    %20 = vector.multi_reduction <maximumf>, %18, %cst_18 [1] : vector<1x8x1xf32> to vector<1x1xf32>
    %21 = vector.shape_cast %20 : vector<1x1xf32> to vector<1x1x1xf32>
    %22 = arith.maximumf %19, %21 : vector<1x1x1xf32>
    %23 = arith.subf %19, %22 : vector<1x1x1xf32>
    %24 = math.exp %23 : vector<1x1x1xf32>
    %25 = vector.broadcast %22 : vector<1x1x1xf32> to vector<1x8x1xf32>
    %26 = arith.subf %18, %25 : vector<1x8x1xf32>
    %27 = math.exp %26 : vector<1x8x1xf32>
    %c0_19 = arith.constant 0 : index
    %c0_20 = arith.constant 0 : index
    %c0_21 = arith.constant 0 : index
    %28 = vector.load %arg10[%c0_19, %c0_20, %c0_21] : memref<1x1x1xf32, #tpu.memory_space<vmem>>, vector<1x1x1xf32>
    %29 = arith.mulf %24, %28 : vector<1x1x1xf32>
    %cst_22 = arith.constant dense<0.000000e+00> : vector<1x1xf32>
    %30 = vector.multi_reduction <add>, %27, %cst_22 [1] : vector<1x8x1xf32> to vector<1x1xf32>
    %31 = vector.shape_cast %30 : vector<1x1xf32> to vector<1x1x1xf32>
    %32 = arith.addf %29, %31 : vector<1x1x1xf32>
    %c0_23 = arith.constant 0 : index
    %c0_24 = arith.constant 0 : index
    %c0_25 = arith.constant 0 : index
    %33 = vector.load %arg10[%c0_23, %c0_24, %c0_25] : memref<1x1x1xf32, #tpu.memory_space<vmem>>, vector<1x1x1xf32>
    tpu.vector_store %arg10[%c0_23, %c0_24, %c0_25], %32 {strides = array<i32>} : memref<1x1x1xf32, #tpu.memory_space<vmem>>, vector<1x1x1xf32>,
    %34 = vector.broadcast %27 : vector<1x8x1xf32> to vector<1x8x32xf32>
    %35 = arith.mulf %34, %3 : vector<1x8x32xf32>
    %cst_26 = arith.constant dense<0.000000e+00> : vector<1x32xf32>
    %36 = vector.multi_reduction <add>, %35, %cst_26 [1] : vector<1x8x32xf32> to vector<1x32xf32>
    %37 = vector.shape_cast %36 : vector<1x32xf32> to vector<1x1x32xf32>
    %c0_27 = arith.constant 0 : index
    %c0_28 = arith.constant 0 : index
    %c0_29 = arith.constant 0 : index
    %38 = vector.load %arg11[%c0_27, %c0_28, %c0_29] : memref<1x1x32xf32, #tpu.memory_space<vmem>>, vector<1x1x32xf32>
    %39 = vector.broadcast %24 : vector<1x1x1xf32> to vector<1x1x32xf32>
    %40 = arith.mulf %39, %38 : vector<1x1x32xf32>
    %41 = arith.addf %40, %37 : vector<1x1x32xf32>
    %c0_30 = arith.constant 0 : index
    %c0_31 = arith.constant 0 : index
    %c0_32 = arith.constant 0 : index
    %42 = vector.load %arg11[%c0_30, %c0_31, %c0_32] : memref<1x1x32xf32, #tpu.memory_space<vmem>>, vector<1x1x32xf32>
    tpu.vector_store %arg11[%c0_30, %c0_31, %c0_32], %41 {strides = array<i32>} : memref<1x1x32xf32, #tpu.memory_space<vmem>>, vector<1x1x32xf32>,
    %c0_33 = arith.constant 0 : index
    %c0_34 = arith.constant 0 : index
    %c0_35 = arith.constant 0 : index
    %43 = vector.load %arg9[%c0_33, %c0_34, %c0_35] : memref<1x1x1xf32, #tpu.memory_space<vmem>>, vector<1x1x1xf32>
    tpu.vector_store %arg9[%c0_33, %c0_34, %c0_35], %22 {strides = array<i32>} : memref<1x1x1xf32, #tpu.memory_space<vmem>>, vector<1x1x1xf32>,
    %c1_i32 = arith.constant 1 : i32
    %44 = arith.cmpi eq, %arg1, %c1_i32 : i32
    %45 = arith.extui %44 : i1 to i32
    %c0_i32_36 = arith.constant 0 : i32
    %46 = arith.cmpi ne, %45, %c0_i32_36 : i32
    scf.if %46 {
      %c0_37 = arith.constant 0 : index
      %c0_38 = arith.constant 0 : index
      %c0_39 = arith.constant 0 : index
      %47 = vector.load %arg11[%c0_37, %c0_38, %c0_39] : memref<1x1x32xf32, #tpu.memory_space<vmem>>, vector<1x1x32xf32>
      %c0_40 = arith.constant 0 : index
      %c0_41 = arith.constant 0 : index
      %c0_42 = arith.constant 0 : index
      %48 = vector.load %arg10[%c0_40, %c0_41, %c0_42] : memref<1x1x1xf32, #tpu.memory_space<vmem>>, vector<1x1x1xf32>
      %49 = vector.broadcast %48 : vector<1x1x1xf32> to vector<1x1x32xf32>
      %50 = arith.divf %47, %49 : vector<1x1x32xf32>
      %c0_43 = arith.constant 0 : index
      %c0_44 = arith.constant 0 : index
      %c0_45 = arith.constant 0 : index
      %51 = vector.load %arg8[%c0_43, %c0_44, %c0_45] : memref<1x1x32xf32, #tpu.memory_space<vmem>>, vector<1x1x32xf32>
      tpu.vector_store %arg8[%c0_43, %c0_44, %c0_45], %50 {strides = array<i32>} : memref<1x1x32xf32, #tpu.memory_space<vmem>>, vector<1x1x32xf32>,
    } else {
    }
    return
  }
  func.func @transform_0(%arg0: i32, %arg1: i32) -> (i32, i32, i32) {
    %c0_i32 = arith.constant 0 : i32
    %c0_i32_0 = arith.constant 0 : i32
    return %arg0, %arg1, %c0_i32 : i32, i32, i32
  }
  func.func @transform_1(%arg0: i32, %arg1: i32) -> (i32, i32, i32) {
    %c0_i32 = arith.constant 0 : i32
    %c0_i32_0 = arith.constant 0 : i32
    return %arg0, %arg1, %c0_i32 : i32, i32, i32
  }
  func.func @transform_2(%arg0: i32, %arg1: i32) -> (i32, i32) {
    %c0_i32 = arith.constant 0 : i32
    %c0_i32_0 = arith.constant 0 : i32
    %c0_i32_1 = arith.constant 0 : i32
    return %c0_i32, %c0_i32_0 : i32, i32
  }
  func.func @transform_3(%arg0: i32, %arg1: i32) -> (i32, i32) {
    %c0_i32 = arith.constant 0 : i32
    %c0_i32_0 = arith.constant 0 : i32
    %c0_i32_1 = arith.constant 0 : i32
    return %c0_i32, %c0_i32_0 : i32, i32
  }
  func.func @transform_4(%arg0: i32, %arg1: i32) -> (i32, i32) {
    %c0_i32 = arith.constant 0 : i32
    %c0_i32_0 = arith.constant 0 : i32
    %c0_i32_1 = arith.constant 0 : i32
    return %c0_i32, %c0_i32_0 : i32, i32
  }
  func.func @transform_5(%arg0: i32, %arg1: i32) -> (i32, i32) {
    %c0_i32 = arith.constant 0 : i32
    %c0_i32_0 = arith.constant 0 : i32
    %c0_i32_1 = arith.constant 0 : i32
    return %c0_i32, %c0_i32_0 : i32, i32
  }
  func.func @transform_6(%arg0: i32, %arg1: i32) -> (i32, i32, i32) {
    %c0_i32 = arith.constant 0 : i32
    %c0_i32_0 = arith.constant 0 : i32
    %c0_i32_1 = arith.constant 0 : i32
    return %arg0, %c0_i32, %c0_i32_0 : i32, i32, i32
  }
}

</mosaic_0001>

<llo_original>
// kernel: tpu_custom_call.1
$region0: #{tpu_custom_call.1}
  #allocation0 [shape = 'u32[]', space=smem, size = 0x4, offset = 0x4, fixed_abs, tag = 'smem constant byte address 0x4 - core index']
  #allocation1 [shape = 'u32[72,128]{1,0:T(1,128)}', space=vmem, size = 0x9000, scoped, tag = 'internal scratch']
  #allocation2 [shape = 'f32[1,1,1]{2,1,0:T(1,128)}', space=vmem, size = 0x200, scoped, tag = 'scratch operand']
  #allocation3 [shape = 'f32[1,1,1]{2,1,0:T(1,128)}', space=vmem, size = 0x200, scoped, tag = 'scratch operand']
  #allocation4 [shape = 'f32[1,1,32]{2,1,0:T(1,128)}', space=vmem, size = 0x200, scoped, tag = 'scratch operand']
  #allocation5 [shape = 'f32[1,1]{1,0:T(1,128)S(1)}', space=vmem, size = 0x200, scoped, tag = 'scoped memory for tpu_custom_call.1']
  %s0 = inlined_call_operand.vmem [shape: f32[2,16,32], index: 0, kind: input, shape index: {}]
  %s1 = inlined_call_operand.vmem [shape: f32[2,16,1], index: 1, kind: input, shape index: {}]
  %s2 = inlined_call_operand.vmem [shape: f32[32,16], index: 2, kind: input, shape index: {}]
  %s3 = inlined_call_operand.vmem [shape: f32[1,16], index: 3, kind: input, shape index: {}]
  %s4 = inlined_call_operand.vmem [shape: f32[16,1], index: 4, kind: input, shape index: {}]
  %s5 = inlined_call_operand.<no memory space> [shape: f32[1,1], index: 5, kind: input, shape index: {}]
  %s6 = inlined_call_operand.hbm [shape: f32[2,1,32], index: 6, kind: output, shape index: {}]
  %s7 = sld [smem:[#allocation0]]
  $region65: #{tpu_custom_call.1} parent=0
    _
  %s9 = ssub.s32 1, %s7
  %s10 = scalar_select 0, %s9, %s7
  %v11 = vstv %s5
  %12 = vst [vmem:[#allocation5] sm:$0x1] %v11
  $region1: #{tpu_custom_call.1} parent=0
    #allocation6 [shape = 'u8[1024]{0}', space=vmem, size = 0x400, scoped, tag = 'output window, operand 0']
    #allocation7 [shape = 's32[2]{0}', space=sflag, size = 0x8, scoped, tag = 'scoped memory for tpu_custom_call.1']
    %13 = vsyncpa [#allocation7], 0
    %s14 = scalar_lea.sflag [#allocation7], 1
    %15 = vsyncpa %s14, 0
    loop: start=0, step=1, limit=6
    $region2: #{tpu_custom_call.1} parent=1 // loop_pre_header
      _
    $region3: #{tpu_custom_call.1} parent=1 // loop_header
      %s17 = sphi 0, %s21
      %p18 = scmp.ge.s32.totalorder %s17, 6
      %s24 = sphi 0, %s36
      %s25 = sphi 0, %s32
      %s26 = sphi 0, %s24
      %s27 = sphi 0, %s25
      %s28 = sphi 0, %s26
      %s29 = sphi 0, %s27
      %s41 = sphi 0, %s43
      %s44 = sphi 0, %s41
      %s45 = sphi 0, %s44
      %s61 = sphi 0, %s45
      %s69 = sphi 0, %s71
      %s72 = sphi 0, %s69
      %s73 = sphi 0, %s72
      %s89 = sphi 0, %s73
      %s93 = sphi 0, %s93
      %s95 = sphi 0, %s93
      %s96 = sphi 0, %s95
      %s110 = sphi 0, %s96
      %s114 = sphi 0, %s114
      %s116 = sphi 0, %s114
      %s117 = sphi 0, %s116
      %s131 = sphi 0, %s117
      %s135 = sphi 0, %s135
      %s137 = sphi 0, %s135
      %s138 = sphi 0, %s137
      %s152 = sphi 0, %s138
      %s156 = sphi 0, %s156
      %s158 = sphi 0, %s156
      %s159 = sphi 0, %s158
      %s173 = sphi 0, %s159
      %s179 = sphi 0, %s181
      %s182 = sphi 0, %s179
      %s183 = sphi 0, %s182
      %s199 = sphi 0, %s183
    $region4: #{tpu_custom_call.1} parent=1 // loop_header_branch
      %20 = sbr.rel (%p18) target = $region8
    $region5: #{tpu_custom_call.1} parent=1 // loop_body
      %s22 = ssub.s32 %s17, 1
      %s23 = ssub.s32 %s17, 2
      %s30 = sadd.s32 1, %s25
      %p31 = scmp.ge.s32.totalorder %s30, 2
      %s32 = scalar_select %p31, 0, %s30
      %s33 = sadd.s32 1, %s24
      %s34 = scalar_select %p31, %s33, %s24
      %p35 = scmp.ge.s32.totalorder %s34, 2
      %s36 = scalar_select %p35, 0, %s34
      %s37 = ssub.s32 %s24, %s36
      %s38 = ssub.s32 %s25, %s32
      %s39 = sor.u32 %s37, %s38
      %p40 = scmp.eq.s32.totalorder %s39, 0
      %s42 = sadd.s32 %s41, 1
      %s43 = scalar_select %p40, %s41, %s42
      %p46 = pneg %p40
      %p47 = scmp.eq.s32.totalorder %s17, 3
      %p48 = por %p46, %p47
      %p49 = scmp.ne.s32.totalorder %s41, %s44
      %p50 = scmp.eq.s32.totalorder %s17, 0
      %p51 = por %p49, %p50
      %p52 = scmp.ne.s32.totalorder %s41, %s44
      %p53 = scmp.eq.s32.totalorder %s22, 3
      %p54 = por %p52, %p53
      %p55 = scmp.ne.s32.totalorder %s44, %s45
      %p56 = scmp.eq.s32.totalorder %s22, 0
      %p57 = por %p55, %p56
      %p58 = scmp.ne.s32.totalorder %s44, %s45
      %p59 = scmp.eq.s32.totalorder %s23, 3
      %p60 = por %p58, %p59
      %p62 = scmp.ne.s32.totalorder %s45, %s61
      %p63 = scmp.eq.s32.totalorder %s23, 0
      %p64 = por %p62, %p63
      %s65 = ssub.s32 %s24, %s36
      %s66 = ssub.s32 %s25, %s32
      %s67 = sor.u32 %s65, %s66
      %p68 = scmp.eq.s32.totalorder %s67, 0
      %s70 = sadd.s32 %s69, 1
      %s71 = scalar_select %p68, %s69, %s70
      %p74 = pneg %p68
      %p75 = scmp.eq.s32.totalorder %s17, 3
      %p76 = por %p74, %p75
      %p77 = scmp.ne.s32.totalorder %s69, %s72
      %p78 = scmp.eq.s32.totalorder %s17, 0
      %p79 = por %p77, %p78
      %p80 = scmp.ne.s32.totalorder %s69, %s72
      %p81 = scmp.eq.s32.totalorder %s22, 3
      %p82 = por %p80, %p81
      %p83 = scmp.ne.s32.totalorder %s72, %s73
      %p84 = scmp.eq.s32.totalorder %s22, 0
      %p85 = por %p83, %p84
      %p86 = scmp.ne.s32.totalorder %s72, %s73
      %p87 = scmp.eq.s32.totalorder %s23, 3
      %p88 = por %p86, %p87
      %p90 = scmp.ne.s32.totalorder %s73, %s89
      %p91 = scmp.eq.s32.totalorder %s23, 0
      %p92 = por %p90, %p91
      %s94 = sadd.s32 %s93, 1
      %p97 = scmp.eq.s32.totalorder %s17, 3
      %p98 = scmp.ne.s32.totalorder %s93, %s95
      %p99 = scmp.eq.s32.totalorder %s17, 0
      %p100 = por %p98, %p99
      %p101 = scmp.ne.s32.totalorder %s93, %s95
      %p102 = scmp.eq.s32.totalorder %s22, 3
      %p103 = por %p101, %p102
      %p104 = scmp.ne.s32.totalorder %s95, %s96
      %p105 = scmp.eq.s32.totalorder %s22, 0
      %p106 = por %p104, %p105
      %p107 = scmp.ne.s32.totalorder %s95, %s96
      %p108 = scmp.eq.s32.totalorder %s23, 3
      %p109 = por %p107, %p108
      %p111 = scmp.ne.s32.totalorder %s96, %s110
      %p112 = scmp.eq.s32.totalorder %s23, 0
      %p113 = por %p111, %p112
      %s115 = sadd.s32 %s114, 1
      %p118 = scmp.eq.s32.totalorder %s17, 3
      %p119 = scmp.ne.s32.totalorder %s114, %s116
      %p120 = scmp.eq.s32.totalorder %s17, 0
      %p121 = por %p119, %p120
      %p122 = scmp.ne.s32.totalorder %s114, %s116
      %p123 = scmp.eq.s32.totalorder %s22, 3
      %p124 = por %p122, %p123
      %p125 = scmp.ne.s32.totalorder %s116, %s117
      %p126 = scmp.eq.s32.totalorder %s22, 0
      %p127 = por %p125, %p126
      %p128 = scmp.ne.s32.totalorder %s116, %s117
      %p129 = scmp.eq.s32.totalorder %s23, 3
      %p130 = por %p128, %p129
      %p132 = scmp.ne.s32.totalorder %s117, %s131
      %p133 = scmp.eq.s32.totalorder %s23, 0
      %p134 = por %p132, %p133
      %s136 = sadd.s32 %s135, 1
      %p139 = scmp.eq.s32.totalorder %s17, 3
      %p140 = scmp.ne.s32.totalorder %s135, %s137
      %p141 = scmp.eq.s32.totalorder %s17, 0
      %p142 = por %p140, %p141
      %p143 = scmp.ne.s32.totalorder %s135, %s137
      %p144 = scmp.eq.s32.totalorder %s22, 3
      %p145 = por %p143, %p144
      %p146 = scmp.ne.s32.totalorder %s137, %s138
      %p147 = scmp.eq.s32.totalorder %s22, 0
      %p148 = por %p146, %p147
      %p149 = scmp.ne.s32.totalorder %s137, %s138
      %p150 = scmp.eq.s32.totalorder %s23, 3
      %p151 = por %p149, %p150
      %p153 = scmp.ne.s32.totalorder %s138, %s152
      %p154 = scmp.eq.s32.totalorder %s23, 0
      %p155 = por %p153, %p154
      %s157 = sadd.s32 %s156, 1
      %p160 = scmp.eq.s32.totalorder %s17, 3
      %p161 = scmp.ne.s32.totalorder %s156, %s158
      %p162 = scmp.eq.s32.totalorder %s17, 0
      %p163 = por %p161, %p162
      %p164 = scmp.ne.s32.totalorder %s156, %s158
      %p165 = scmp.eq.s32.totalorder %s22, 3
      %p166 = por %p164, %p165
      %p167 = scmp.ne.s32.totalorder %s158, %s159
      %p168 = scmp.eq.s32.totalorder %s22, 0
      %p169 = por %p167, %p168
      %p170 = scmp.ne.s32.totalorder %s158, %s159
      %p171 = scmp.eq.s32.totalorder %s23, 3
      %p172 = por %p170, %p171
      %p174 = scmp.ne.s32.totalorder %s159, %s173
      %p175 = scmp.eq.s32.totalorder %s23, 0
      %p176 = por %p174, %p175
      %s177 = ssub.s32 %s24, %s36
      %p178 = scmp.eq.s32.totalorder %s177, 0
      %s180 = sadd.s32 %s179, 1
      %s181 = scalar_select %p178, %s179, %s180
      %p184 = pneg %p178
      %p185 = scmp.eq.s32.totalorder %s17, 3
      %p186 = por %p184, %p185
      %p187 = scmp.ne.s32.totalorder %s179, %s182
      %p188 = scmp.eq.s32.totalorder %s17, 0
      %p189 = por %p187, %p188
      %p190 = scmp.ne.s32.totalorder %s179, %s182
      %p191 = scmp.eq.s32.totalorder %s22, 3
      %p192 = por %p190, %p191
      %p193 = scmp.ne.s32.totalorder %s182, %s183
      %p194 = scmp.eq.s32.totalorder %s22, 0
      %p195 = por %p193, %p194
      %p196 = scmp.ne.s32.totalorder %s182, %s183
      %p197 = scmp.eq.s32.totalorder %s23, 3
      %p198 = por %p196, %p197
      %p200 = scmp.ne.s32.totalorder %s183, %s199
      %p201 = scmp.eq.s32.totalorder %s23, 0
      %p202 = por %p200, %p201
      %p203 = scmp.le.s32.totalorder 1, %s17
      %p204 = scmp.lt.s32.totalorder %s17, 5
      %p205 = pnand %p203, %p204
      %p206 = pneg %p205
      // Predicated region
      $region9: #{tpu_custom_call.1} parent=5 // pred_check
        _
      $region10: #{tpu_custom_call.1} parent=5 // pred_check_branch
        %208 = sbr.rel (%p205) target = $region12
      $region11: #{tpu_custom_call.1} parent=5 // pred_region
        %s209 = ssub.s32 %s17, 1
        // Predicated region
        $region13: #{tpu_custom_call.1} parent=11 // pred_check
          %p210 = pneg %p106
        $region14: #{tpu_custom_call.1} parent=11 // pred_check_branch
          %212 = sbr.rel (%p210) target = $region16
        $region15: #{tpu_custom_call.1} parent=11 // pred_region
          _
        $region16: #{tpu_custom_call.1} parent=11 // pred_fallthru
          _
        // Predicated region
        $region17: #{tpu_custom_call.1} parent=11 // pred_check
          %p213 = pneg %p127
        $region18: #{tpu_custom_call.1} parent=11 // pred_check_branch
          %215 = sbr.rel (%p213) target = $region20
        $region19: #{tpu_custom_call.1} parent=11 // pred_region
          _
        $region20: #{tpu_custom_call.1} parent=11 // pred_fallthru
          _
        // Predicated region
        $region21: #{tpu_custom_call.1} parent=11 // pred_check
          %p216 = pneg %p148
        $region22: #{tpu_custom_call.1} parent=11 // pred_check_branch
          %218 = sbr.rel (%p216) target = $region24
        $region23: #{tpu_custom_call.1} parent=11 // pred_region
          _
        $region24: #{tpu_custom_call.1} parent=11 // pred_fallthru
          _
        // Predicated region
        $region25: #{tpu_custom_call.1} parent=11 // pred_check
          %p219 = pneg %p169
        $region26: #{tpu_custom_call.1} parent=11 // pred_check_branch
          %221 = sbr.rel (%p219) target = $region28
        $region27: #{tpu_custom_call.1} parent=11 // pred_region
          _
        $region28: #{tpu_custom_call.1} parent=11 // pred_fallthru
          _
      $region12: #{tpu_custom_call.1} parent=5 // pred_fallthru
        _
      %p222 = scmp.lt.s32.totalorder %s17, 4
      // Predicated region
      $region29: #{tpu_custom_call.1} parent=5 // pred_check
        %p223 = pneg %p222
      $region30: #{tpu_custom_call.1} parent=5 // pred_check_branch
        %225 = sbr.rel (%p223) target = $region32
      $region31: #{tpu_custom_call.1} parent=5 // pred_region
        // Predicated region
        $region33: #{tpu_custom_call.1} parent=31 // pred_check
          %p226 = pneg %p51
        $region34: #{tpu_custom_call.1} parent=31 // pred_check_branch
          %228 = sbr.rel (%p226) target = $region36
        $region35: #{tpu_custom_call.1} parent=31 // pred_region
          %p229 = scmp.lt.s32.totalorder %s24, 1
          %s230 = scalar_select %p229, %s24, 1
          %p231 = scmp.lt.s32.totalorder %s25, 1
          %s232 = scalar_select %p231, %s25, 1
          %s233 = smul.addr %s230, 2
          %s234 = sadd.s32 %s232, %s233
          %s235 = smul.addr %s234, 8
          %s236 = scalar_lea.vmem %s0, %s235
        $region36: #{tpu_custom_call.1} parent=31 // pred_fallthru
          _
        // Predicated region
        $region37: #{tpu_custom_call.1} parent=31 // pred_check
          %p237 = pneg %p79
        $region38: #{tpu_custom_call.1} parent=31 // pred_check_branch
          %239 = sbr.rel (%p237) target = $region40
        $region39: #{tpu_custom_call.1} parent=31 // pred_region
          %p240 = scmp.lt.s32.totalorder %s24, 1
          %s241 = scalar_select %p240, %s24, 1
          %p242 = scmp.lt.s32.totalorder %s25, 1
          %s243 = scalar_select %p242, %s25, 1
          %s244 = smul.addr %s241, 2
          %s245 = sadd.s32 %s243, %s244
          %s246 = smul.addr %s245, 8
          %s247 = scalar_lea.vmem %s1, %s246
        $region40: #{tpu_custom_call.1} parent=31 // pred_fallthru
          _
      $region32: #{tpu_custom_call.1} parent=5 // pred_fallthru
        _
      %p248 = scmp.le.s32.totalorder 1, %s17
      %p249 = scmp.lt.s32.totalorder %s17, 5
      %p250 = pnand %p248, %p249
      %p251 = pneg %p250
      // Predicated region
      $region41: #{tpu_custom_call.1} parent=5 // pred_check
        _
      $region42: #{tpu_custom_call.1} parent=5 // pred_check_branch
        %253 = sbr.rel (%p250) target = $region44
      $region43: #{tpu_custom_call.1} parent=5 // pred_region
        %s254 = ssub.s32 %s17, 1
        %p255 = scmp.lt.s32.totalorder %s26, 1
        %s256 = scalar_select %p255, %s26, 1
        %p257 = scmp.lt.s32.totalorder %s27, 1
        %s258 = scalar_select %p257, %s27, 1
        %s259 = smul.addr %s256, 2
        %s260 = sadd.s32 %s258, %s259
        %s261 = smul.addr %s260, 8
        %s262 = scalar_lea.vmem %s0, %s261
        %p263 = pneg %p57
        %p264 = pneg %p54
        %p265 = scmp.lt.s32.totalorder %s26, 1
        %s266 = scalar_select %p265, %s26, 1
        %p267 = scmp.lt.s32.totalorder %s27, 1
        %s268 = scalar_select %p267, %s27, 1
        %s269 = smul.addr %s266, 2
        %s270 = sadd.s32 %s268, %s269
        %s271 = smul.addr %s270, 8
        %s272 = scalar_lea.vmem %s1, %s271
        %p273 = pneg %p85
        %p274 = pneg %p82
        %p275 = pneg %p106
        %p276 = pneg %p103
        %p277 = pneg %p127
        %p278 = pneg %p124
        %p279 = pneg %p148
        %p280 = pneg %p145
        %p281 = pneg %p169
        %p282 = pneg %p166
        %p283 = pneg %p195
        %p284 = pneg %p192
        %s285 = sand.u32 %s182, 1
        %s286 = scalar_lea.sflag [#allocation7], %s285
        %s287 = sand.u32 %s182, 1
        %s288 = scalar_lea.vmem [#allocation6], %s287
        %p289 = scmp.lt.s32.totalorder %s26, 1
        %s290 = scalar_select %p289, %s26, 1
        %p291 = scmp.lt.s32.totalorder %s27, 1
        %s292 = scalar_select %p291, %s27, 1
        %s293 = smul.addr %s290, 2
        %s294 = sadd.s32 %s292, %s293
        %s295 = smul.addr %s294, 8
        %s296 = scalar_lea.vmem %s0, %s295
        %p297 = scmp.lt.s32.totalorder %s26, 1
        %s298 = scalar_select %p297, %s26, 1
        %p299 = scmp.lt.s32.totalorder %s27, 1
        %s300 = scalar_select %p299, %s27, 1
        %s301 = smul.addr %s298, 2
        %s302 = sadd.s32 %s300, %s301
        %s303 = smul.addr %s302, 8
        %s304 = scalar_lea.vmem %s1, %s303
        %p305 = scmp.eq.s32.totalorder %s27, 0
        // Predicated region
        $region45: #{tpu_custom_call.1} parent=43 // pred_check
          %p306 = pneg %p305
        $region46: #{tpu_custom_call.1} parent=43 // pred_check_branch
          %308 = sbr.rel (%p306) target = $region48
        $region47: #{tpu_custom_call.1} parent=43 // pred_region
          %vm309 = vcmask 0
          %310 = vst.msk [vmem:[#allocation2] sm:$0x1] %vm309, -inf
          %311 = vst.msk [vmem:[#allocation3] sm:$0x1] %vm309, 0.0
          %vm312 = vcmask 253952
          %313 = vst.msk [vmem:[#allocation4] sm:$0x1] %vm312, 0.0
        $region48: #{tpu_custom_call.1} parent=43 // pred_fallthru
          _
        %v314 = vld [vmem:[%s296] sm:$0xff]
        %v315 = vld [vmem:[%s2] sm:$0xff]
        %v316 = vld [vmem:[%s2 + $0x8] sm:$0xff]
        %v317 = vld [vmem:[%s2 + $0x10] sm:$0xff]
        %v318 = vld [vmem:[%s2 + $0x18] sm:$0xff]
        %v319 = vld [vmem:[%s3] sm:$0x1]
        %v321 = vperm.slane %v319, 0
        %vm323 = vcmask 261120
        %v325 = vsel %vm323, %v314, 0
        %327 = vmatpush.msra.mxu0 0.0
        %328 = vmatpush.msra.mxu0 0.0
        %329 = vmatpush.msra.mxu0 0.0
        %330 = vmatpush.msra.mxu0 0.0
        %331 = vmatpush.msra.mxu0 0.0
        %332 = vmatpush.msra.mxu0 0.0
        %333 = vmatpush.msra.mxu0 0.0
        %334 = vmatpush.msra.mxu0 0.0
        %335 = vmatpush.msra.mxu0 0.0
        %336 = vmatpush.msra.mxu0 0.0
        %337 = vmatpush.msra.mxu0 0.0
        %338 = vmatpush.msra.mxu0 0.0
        %339 = vmatpush.msra.mxu0 %v318
        %340 = vmatpush.msra.mxu0 %v317
        %341 = vmatpush.msra.mxu0 %v316
        %342 = vmatpush.msra.mxu0 %v315
        %343 = vmatmul.f32.gmra.mxu0 %v325
        %v344 = vpop.f32.mrf.mxu0
        %v345 = vadd.f32 %v321, %v344
        %346 = vdwg.mxu0
        %v347 = vtanh.pop %v345
        %v348 = vld [vmem:[%s4] sm:$0xff]
        %v349 = vld [vmem:[%s4 + $0x8] sm:$0xff]
        %v350 = vld [vmem:[#allocation5] sm:$0x1]
        %v352 = vperm.slane %v350, 0
        %vm354 = vcmask 130048
        %v356 = vsel %vm354, %v347, 0
        %358 = vmatpush.msra.mxu0 0.0
        %359 = vmatpush.msra.mxu0 0.0
        %360 = vmatpush.msra.mxu0 0.0
        %361 = vmatpush.msra.mxu0 0.0
        %362 = vmatpush.msra.mxu0 0.0
        %363 = vmatpush.msra.mxu0 0.0
        %364 = vmatpush.msra.mxu0 0.0
        %365 = vmatpush.msra.mxu0 0.0
        %366 = vmatpush.msra.mxu0 0.0
        %367 = vmatpush.msra.mxu0 0.0
        %368 = vmatpush.msra.mxu0 0.0
        %369 = vmatpush.msra.mxu0 0.0
        %370 = vmatpush.msra.mxu0 0.0
        %371 = vmatpush.msra.mxu0 0.0
        %372 = vmatpush.msra.mxu0 %v349
        %373 = vmatpush.msra.mxu0 %v348
        %374 = vmatmul.f32.gmra.mxu0 %v356
        %v375 = vpop.f32.mrf.mxu0
        %v376 = vadd.f32 %v352, %v375
        %377 = vdwg.mxu0
        %v378 = vld [vmem:[%s304] sm:$0xff]
        %v379 = vadd.f32 %v376, %v378
        %v380 = vld [vmem:[#allocation2] sm:$0x1]
        %vm381 = vcmask 7168
        %v382 = vsel %vm381, %v379, -inf
        %v383 = vrot.slane %v382, 4
        %v384 = vmax.f32 %v382, %v383
        %v385 = vrot.slane %v384, 2
        %v386 = vmax.f32 %v384, %v385
        %v387 = vrot.slane %v386, 1
        %v388 = vmax.f32 %v386, %v387
        %v389 = vmax.f32 %v380, %v388
        %v390 = vsub.f32 %v380, %v389
        %v391 = vmul.f32 %v390, 1.442695
        %v392 = vpow.pop %v391
        %v394 = vperm.slane %v389, 0
        %v396 = vsub.f32 %v379, %v394
        %v397 = vmul.f32 %v396, 1.442695
        %v398 = vpow.pop %v397
        %v399 = vld [vmem:[#allocation3] sm:$0x1]
        %v400 = vmul.f32 %v392, %v399
        %v401 = vsel %vm381, %v398, 0.0
        %v402 = vrot.slane %v401, 4
        %v403 = vadd.f32 %v401, %v402
        %v404 = vrot.slane %v403, 2
        %v405 = vadd.f32 %v403, %v404
        %v406 = vrot.slane %v405, 1
        %v407 = vadd.f32 %v405, %v406
        %v408 = vadd.f32 %v400, %v407
        %vm409 = vcmask 0
        %410 = vst.msk [vmem:[#allocation3] sm:$0x1] %vm409, %v408
        %412 = vset.pattern.permute.xlu0 0
        %413 = vperm.xlu0 %412, %v398
        %v414 = vpop.permute.xlu0 %413
        %v416 = vmul.f32 %v414, %v314
        %v417 = vsel %vm323, %v416, 0.0
        %v418 = vrot.slane %v417, 4
        %v419 = vadd.f32 %v417, %v418
        %v420 = vrot.slane %v419, 2
        %v421 = vadd.f32 %v419, %v420
        %v422 = vrot.slane %v421, 1
        %v423 = vadd.f32 %v421, %v422
        %v424 = vld [vmem:[#allocation4] sm:$0x1]
        %426 = vset.pattern.permute.xlu0 0
        %427 = vperm.xlu0 %426, %v392
        %v428 = vpop.permute.xlu0 %427
        %v430 = vperm.slane %v428, 0
        %v431 = vmul.f32 %v430, %v424
        %v432 = vadd.f32 %v431, %v423
        %vm433 = vcmask 253952
        %434 = vst.msk [vmem:[#allocation4] sm:$0x1] %vm433, %v432
        %435 = vst.msk [vmem:[#allocation2] sm:$0x1] %vm409, %v389
        %p436 = scmp.eq.s32.totalorder %s27, 1
        // Predicated region
        $region49: #{tpu_custom_call.1} parent=43 // pred_check
          %p437 = pneg %p436
        $region50: #{tpu_custom_call.1} parent=43 // pred_check_branch
          %439 = sbr.rel (%p437) target = $region52
        $region51: #{tpu_custom_call.1} parent=43 // pred_region
          %v440 = vld [vmem:[#allocation4] sm:$0x1]
          %v441 = vld [vmem:[#allocation3] sm:$0x1]
          %443 = vset.pattern.permute.xlu0 0
          %444 = vperm.xlu0 %443, %v441
          %v445 = vpop.permute.xlu0 %444
          %v447 = vperm.slane %v445, 0
          %v448 = vrcp.pop %v447
          %v449 = vmul.f32 %v447, %v448
          %v450 = vsub.f32 1.0, %v449
          %v451 = vmul.f32 %v448, %v450
          %v452 = vadd.f32 %v448, %v451
          %vm453 = vweird.f32 %v447
          %vm454 = vweird.f32 %v448
          %vm455 = vmor %vm453, %vm454
          %v456 = vsel %vm455, %v448, %v452
          %v457 = vand.u32 2147483647, %v447
          %vm458 = vcmp.eq.f32.partialorder %v457, 8.507059e+37
          %v459 = vand.u32 %v447, 2147483648
          %v460 = vor.u32 1.1754944e-38, %v459
          %v461 = vsel %vm458, %v460, %v456
          %v462 = vmul.f32 %v440, %v461
          %463 = vst.msk [vmem:[%s288] sm:$0x1] %vm433, %v462
        $region52: #{tpu_custom_call.1} parent=43 // pred_fallthru
          _
        %s464 = sand.u32 %s182, 1
        %s465 = scalar_lea.sflag [#allocation7], %s464
        %s466 = sand.u32 %s182, 1
        %s467 = scalar_lea.vmem [#allocation6], %s466
        // Predicated region
        $region53: #{tpu_custom_call.1} parent=43 // pred_check
          %p468 = pneg %p192
        $region54: #{tpu_custom_call.1} parent=43 // pred_check_branch
          %470 = sbr.rel (%p468) target = $region56
        $region55: #{tpu_custom_call.1} parent=43 // pred_region
          %472 = vsyncadd %s465, 0
          %s473 = scalar_lea.hbm %s6, %s26
          %s475 = sshll.u32 %s467, 4
          %s476 = int_to_ptr.vmem [resolvable:$true] %s475
          %s477 = sshll.u32 %s473, 4
          %s478 = int_to_ptr.hbm [resolvable:$true] %s477
          %480 = dma.vmem_to_hbm [thread:$0]  %s476, 16, %s478, %s465
        $region56: #{tpu_custom_call.1} parent=43 // pred_fallthru
          _
      $region44: #{tpu_custom_call.1} parent=5 // pred_fallthru
        _
      %p481 = scmp.le.s32.totalorder 2, %s17
      // Predicated region
      $region57: #{tpu_custom_call.1} parent=5 // pred_check
        %p482 = pneg %p481
      $region58: #{tpu_custom_call.1} parent=5 // pred_check_branch
        %484 = sbr.rel (%p482) target = $region60
      $region59: #{tpu_custom_call.1} parent=5 // pred_region
        %s485 = ssub.s32 %s17, 2
        // Predicated region
        $region61: #{tpu_custom_call.1} parent=59 // pred_check
          %p486 = pneg %p198
        $region62: #{tpu_custom_call.1} parent=59 // pred_check_branch
          %488 = sbr.rel (%p486) target = $region64
        $region63: #{tpu_custom_call.1} parent=59 // pred_region
          %s489 = sand.u32 %s183, 1
          %s490 = scalar_lea.sflag [#allocation7], %s489
          %s491 = sand.u32 %s183, 1
          %s492 = scalar_lea.vmem [#allocation6], %s491
          %494 = dma.done %s490, 16
        $region64: #{tpu_custom_call.1} parent=59 // pred_fallthru
          _
      $region60: #{tpu_custom_call.1} parent=5 // pred_fallthru
        _
    $region6: #{tpu_custom_call.1} parent=1 // loop_footer
      %s21 = sadd.s32 1, %s17
    $region7: #{tpu_custom_call.1} parent=1 // loop_footer_branch
      %16 = sbr.rel target = $region3
    $region8: #{tpu_custom_call.1} parent=1 // loop_exit
      _
    %495 = vsyncpa [#allocation7], 1
    %s496 = scalar_lea.sflag [#allocation7], 1
    %497 = vsyncpa %s496, 1

</llo_original>
